<compile_context>
chip_gen: v5e
topology: v5e:2x2
jax: 0.10.0
libtpu: 0.0.40
codegen_flags: <defaults>
</compile_context>

<pallas_src>
import jax
import jax.numpy as jnp
from jax import lax
from jax.experimental import pallas as pl
from jax.experimental.pallas import tpu as pltpu


def _round_up(x, m):
    return (x + m - 1) // m * m


def _largest_divisor_le(n, cap):
    cap = max(1, min(n, cap))
    for d in range(cap, 0, -1):
        if n % d == 0:
            return d
    return 1


def _make_conv_bn_act_kernel(KH, KW, stride, dilation, band_rows, Wout, Cin, Cout_pad):
    """One (batch, row-band) tile per grid step: im2col -> single matmul -> epilogue."""
    h_take = (band_rows - 1) * stride + 1      # input-row span (pre-decimation) per band
    w_take = (Wout - 1) * stride + 1           # input-col span (pre-decimation) per kw
    M = band_rows * Wout
    K = KH * KW * Cin

    def kernel(x_ref, w_ref, scale_ref, shift_ref, o_ref, pmat_ref):
        # x_ref:     (1, Hp, Wp, Cin)      full padded image (resident across bands)
        # w_ref:     (KH*KW*Cin, Cout_pad) weights, rows ordered (kh, kw, ci)
        # scale_ref: (1, Cout_pad) f32     folded BN scale
        # shift_ref: (1, Cout_pad) f32     folded conv-bias + BN shift
        # o_ref:     (1, band_rows, Wout, Cout_pad)
        # pmat_ref:  (M, K)                VMEM im2col scratch
        rb = pl.program_id(1)
        h0 = rb * (band_rows * stride)

        # --- im2col: KH*KW shifted slices -> one (M, K) patch matrix in VMEM ---
        for kh in range(KH):
            for kw in range(KW):
                p = x_ref[0,
                          pl.ds(h0 + kh * dilation, h_take),
                          pl.ds(kw * dilation, w_take),
                          :]
                if stride > 1:
                    # strided decimation done once per (kh, kw) per band,
                    # not per output row.
                    p = p[::stride, ::stride, :]
                col = (kh * KW + kw) * Cin
                pmat_ref[:, col:col + Cin] = p.reshape(M, Cin)

        # --- single MXU matmul over the fused (kh, kw, ci) contraction ---
        acc = jnp.dot(pmat_ref[...], w_ref[...],
                      preferred_element_type=jnp.float32)      # (M, Cout_pad) f32

        # --- fused conv-bias + BatchNorm(eval) + LeakyReLU(0.2), single f32 epilogue ---
        y = acc * scale_ref[...] + shift_ref[...]
        y = jnp.where(y >= 0, y, 0.2 * y)
        o_ref[0] = y.reshape(band_rows, Wout, Cout_pad).astype(o_ref.dtype)

    return kernel


def conv2d_with_activation(x_nchw, weight_oihw, bias, gamma, beta,
                           running_mean, running_var, *,
                           stride=1, padding=1, dilation=1, eps=1e-5,
                           compute_dtype=jnp.bfloat16):
    N, Cin, H, W = x_nchw.shape
    Cout, Cin_w, KH, KW = weight_oihw.shape
    assert Cin_w == Cin, "groups != 1 not supported"

    Hout = (H + 2 * padding - dilation * (KH - 1) - 1) // stride + 1
    Wout = (W + 2 * padding - dilation * (KW - 1) - 1) // stride + 1
    Hp, Wp = H + 2 * padding, W + 2 * padding
    Cout_pad = _round_up(Cout, 128)
    K = KH * KW * Cin

    # Row-band tiling: divisor of Hout so blocks tile the output exactly.
    band_rows = _largest_divisor_le(Hout, max(8, min(64, pl.cdiv(Hout, 2))))
    num_bands = Hout // band_rows
    M = band_rows * Wout

    # ---- glue: layout conversion, spatial padding, weight reshape, BN folding ----
    x = jnp.transpose(x_nchw, (0, 2, 3, 1)).astype(compute_dtype)          # NHWC
    x = jnp.pad(x, ((0, 0), (padding, padding), (padding, padding), (0, 0)))
    w = jnp.transpose(weight_oihw, (2, 3, 1, 0)).reshape(K, Cout)          # (kh,kw,ci) x Cout
    w = jnp.pad(w, ((0, 0), (0, Cout_pad - Cout))).astype(compute_dtype)

    scale = gamma / jnp.sqrt(running_var + eps)                            # (Cout,)
    shift = (bias - running_mean) * scale + beta                           # (Cout,)
    scale2 = jnp.pad(scale, (0, Cout_pad - Cout)).reshape(1, Cout_pad).astype(jnp.float32)
    shift2 = jnp.pad(shift, (0, Cout_pad - Cout)).reshape(1, Cout_pad).astype(jnp.float32)

    kernel = _make_conv_bn_act_kernel(KH, KW, stride, dilation,
                                      band_rows, Wout, Cin, Cout_pad)

    # Explicit VMEM budget (double-buffered in/out blocks + weights + scratch) w/ headroom.
    esize = jnp.dtype(compute_dtype).itemsize
    est = (2 * Hp * Wp * Cin * esize
           + 2 * K * Cout_pad * esize
           + 4 * Cout_pad * 4
           + 2 * band_rows * Wout * Cout_pad * 4
           + M * max(K, 128) * esize)
    vmem_limit = int(min(max(4 * est, 16 * 2**20), 48 * 2**20))

    out_nhwc = pl.pallas_call(
        kernel,
        out_shape=jax.ShapeDtypeStruct((N, Hout, Wout, Cout_pad), x_nchw.dtype),
        grid=(N, num_bands),
        in_specs=[
            # Full padded image per batch element; constant across the band axis
            # so it stays resident in VMEM (halo rows handled in-kernel).
            pl.BlockSpec((1, Hp, Wp, Cin), lambda n, rb: (n, 0, 0, 0)),
            pl.BlockSpec((K, Cout_pad), lambda n, rb: (0, 0)),
            pl.BlockSpec((1, Cout_pad), lambda n, rb: (0, 0)),
            pl.BlockSpec((1, Cout_pad), lambda n, rb: (0, 0)),
        ],
        out_specs=pl.BlockSpec((1, band_rows, Wout, Cout_pad),
                               lambda n, rb: (n, rb, 0, 0)),
        scratch_shapes=[pltpu.VMEM((M, K), compute_dtype)],
        compiler_params=pltpu.CompilerParams(
            dimension_semantics=("parallel", "parallel"),
            vmem_limit_bytes=vmem_limit),
    )(x, w, scale2, shift2)

    out_nhwc = out_nhwc[..., :Cout]                     # drop Cout padding
    return jnp.transpose(out_nhwc, (0, 3, 1, 2))        # back to NCHW


def _reference(x, w, b, gamma, beta, rm, rv, *, stride, padding, dilation, eps=1e-5):
    y = lax.conv_general_dilated(
        x, w, window_strides=(stride, stride),
        padding=[(padding, padding), (padding, padding)],
        rhs_dilation=(dilation, dilation),
        dimension_numbers=("NCHW", "OIHW", "NCHW"))
    y = y + b[None, :, None, None]
    y = (y - rm[None, :, None, None]) / jnp.sqrt(rv + eps)[None, :, None, None]
    y = y * gamma[None, :, None, None] + beta[None, :, None, None]
    return jnp.where(y >= 0, y, 0.2 * y)


if __name__ == "__main__":
    # Module config: Conv2dWithActivation(4, 8, kernel_size=3, stride=1, padding=1)
    N, Cin, H, W = 2, 4, 16, 16
    Cout, KH, KW = 8, 3, 3
    stride, padding, dilation = 1, 1, 1

    key = jax.random.PRNGKey(0)
    kx, kw_, kb, kg, kbeta, km, kv = jax.random.split(key, 7)

    x = jax.random.normal(kx, (N, Cin, H, W), jnp.float32)

    # kaiming_normal_ init: std = sqrt(2 / fan_in), fan_in = Cin*KH*KW
    fan_in = Cin * KH * KW
    weight = jax.random.normal(kw_, (Cout, Cin, KH, KW), jnp.float32) * jnp.sqrt(2.0 / fan_in)
    bias = 0.1 * jax.random.normal(kb, (Cout,), jnp.float32)

    gamma = 1.0 + 0.1 * jax.random.normal(kg, (Cout,), jnp.float32)
    beta = 0.1 * jax.random.normal(kbeta, (Cout,), jnp.float32)
    running_mean = 0.1 * jax.random.normal(km, (Cout,), jnp.float32)
    running_var = 0.5 + 0.5 * jnp.abs(jax.random.normal(kv, (Cout,), jnp.float32))

    # --- f32 operands: tight check against the XLA reference ---
    out_f32 = conv2d_with_activation(
        x, weight, bias, gamma, beta, running_mean, running_var,
        stride=stride, padding=padding, dilation=dilation,
        compute_dtype=jnp.float32)
    out_f32 = jax.block_until_ready(out_f32)

    ref = _reference(x, weight, bias, gamma, beta, running_mean, running_var,
                     stride=stride, padding=padding, dilation=dilation)
    ref = jax.block_until_ready(ref)
    assert out_f32.shape == ref.shape, (out_f32.shape, ref.shape)
    assert jnp.allclose(out_f32, ref, atol=1e-3, rtol=1e-3), \
        float(jnp.max(jnp.abs(out_f32 - ref)))

    # --- bf16 matmul operands (default path, per v6e/v7x guidance): compare against
    #     a reference fed the same bf16-rounded operands (both accumulate in f32) ---
    out_bf16 = conv2d_with_activation(
        x, weight, bias, gamma, beta, running_mean, running_var,
        stride=stride, padding=padding, dilation=dilation,
        compute_dtype=jnp.bfloat16)
    out_bf16 = jax.block_until_ready(out_bf16)

    ref_bf16 = _reference(x.astype(jnp.bfloat16).astype(jnp.float32),
                          weight.astype(jnp.bfloat16).astype(jnp.float32),
                          bias, gamma, beta, running_mean, running_var,
                          stride=stride, padding=padding, dilation=dilation)
    ref_bf16 = jax.block_until_ready(ref_bf16)
    assert jnp.allclose(out_bf16, ref_bf16, atol=5e-3, rtol=5e-3), \
        float(jnp.max(jnp.abs(out_bf16 - ref_bf16)))

    print("KERNEL_OK")
</pallas_src>

<mosaic_0001>
module attributes {stable_mosaic.version = 11 : i64} {
  func.func @kernel(%arg0: i32, %arg1: i32, %arg2: memref<1x18x18x4xf32, #tpu.memory_space<vmem>>, %arg3: memref<36x128xf32, #tpu.memory_space<vmem>>, %arg4: memref<1x128xf32, #tpu.memory_space<vmem>>, %arg5: memref<1x128xf32, #tpu.memory_space<vmem>>, %arg6: memref<1x8x16x128xf32, #tpu.memory_space<vmem>>, %arg7: memref<128x36xf32, #tpu.memory_space<vmem>>) attributes {dimension_semantics = [#tpu.dimension_semantics<parallel>, #tpu.dimension_semantics<parallel>], iteration_bounds = array<i64: 2, 2>, scalar_prefetch = 0 : i64, scratch_operands = 1 : i64, tpu.core_type = #tpu.core_type<tc>, window_params = [{transform_indices = @transform_0, window_bounds = array<i64: 1, 18, 18, 4>}, {pipeline_mode = #tpu.pipeline_mode<synchronous>, transform_indices = @transform_1, window_bounds = array<i64: 36, 128>}, {pipeline_mode = #tpu.pipeline_mode<synchronous>, transform_indices = @transform_2, window_bounds = array<i64: 1, 128>}, {pipeline_mode = #tpu.pipeline_mode<synchronous>, transform_indices = @transform_3, window_bounds = array<i64: 1, 128>}, {transform_indices = @transform_4, window_bounds = array<i64: 1, 8, 16, 128>}]} {
    %c8_i32 = arith.constant 8 : i32
    %0 = arith.muli %arg1, %c8_i32 : i32
    %c0_i32 = arith.constant 0 : i32
    %1 = arith.addi %0, %c0_i32 : i32
    %c0 = arith.constant 0 : index
    %2 = arith.index_cast %1 : i32 to index
    %c0_0 = arith.constant 0 : index
    %c0_1 = arith.constant 0 : index
    %3 = vector.load %arg2[%c0, %2, %c0_0, %c0_1] : memref<1x18x18x4xf32, #tpu.memory_space<vmem>>, vector<1x8x16x4xf32>
    %4 = vector.shape_cast %3 : vector<1x8x16x4xf32> to vector<8x16x4xf32>
    %5 = vector.shape_cast %4 : vector<8x16x4xf32> to vector<128x4xf32>
    %c0_2 = arith.constant 0 : index
    %c0_3 = arith.constant 0 : index
    %6 = vector.load %arg7[%c0_2, %c0_3] : memref<128x36xf32, #tpu.memory_space<vmem>>, vector<128x4xf32>
    tpu.vector_store %arg7[%c0_2, %c0_3], %5 {strides = array<i32>} : memref<128x36xf32, #tpu.memory_space<vmem>>, vector<128x4xf32>,
    %c0_i32_4 = arith.constant 0 : i32
    %7 = arith.addi %0, %c0_i32_4 : i32
    %c0_5 = arith.constant 0 : index
    %8 = arith.index_cast %7 : i32 to index
    %c1 = arith.constant 1 : index
    %c0_6 = arith.constant 0 : index
    %9 = vector.load %arg2[%c0_5, %8, %c1, %c0_6] : memref<1x18x18x4xf32, #tpu.memory_space<vmem>>, vector<1x8x16x4xf32>
    %10 = vector.shape_cast %9 : vector<1x8x16x4xf32> to vector<8x16x4xf32>
    %11 = vector.shape_cast %10 : vector<8x16x4xf32> to vector<128x4xf32>
    %c0_7 = arith.constant 0 : index
    %c4 = arith.constant 4 : index
    %12 = vector.load %arg7[%c0_7, %c4] : memref<128x36xf32, #tpu.memory_space<vmem>>, vector<128x4xf32>
    tpu.vector_store %arg7[%c0_7, %c4], %11 {strides = array<i32>} : memref<128x36xf32, #tpu.memory_space<vmem>>, vector<128x4xf32>,
    %c0_i32_8 = arith.constant 0 : i32
    %13 = arith.addi %0, %c0_i32_8 : i32
    %c0_9 = arith.constant 0 : index
    %14 = arith.index_cast %13 : i32 to index
    %c2 = arith.constant 2 : index
    %c0_10 = arith.constant 0 : index
    %15 = vector.load %arg2[%c0_9, %14, %c2, %c0_10] : memref<1x18x18x4xf32, #tpu.memory_space<vmem>>, vector<1x8x16x4xf32>
    %16 = vector.shape_cast %15 : vector<1x8x16x4xf32> to vector<8x16x4xf32>
    %17 = vector.shape_cast %16 : vector<8x16x4xf32> to vector<128x4xf32>
    %c0_11 = arith.constant 0 : index
    %c8 = arith.constant 8 : index
    %18 = vector.load %arg7[%c0_11, %c8] : memref<128x36xf32, #tpu.memory_space<vmem>>, vector<128x4xf32>
    tpu.vector_store %arg7[%c0_11, %c8], %17 {strides = array<i32>} : memref<128x36xf32, #tpu.memory_space<vmem>>, vector<128x4xf32>,
    %c1_i32 = arith.constant 1 : i32
    %19 = arith.addi %0, %c1_i32 : i32
    %c0_12 = arith.constant 0 : index
    %20 = arith.index_cast %19 : i32 to index
    %c0_13 = arith.constant 0 : index
    %c0_14 = arith.constant 0 : index
    %21 = vector.load %arg2[%c0_12, %20, %c0_13, %c0_14] : memref<1x18x18x4xf32, #tpu.memory_space<vmem>>, vector<1x8x16x4xf32>
    %22 = vector.shape_cast %21 : vector<1x8x16x4xf32> to vector<8x16x4xf32>
    %23 = vector.shape_cast %22 : vector<8x16x4xf32> to vector<128x4xf32>
    %c0_15 = arith.constant 0 : index
    %c12 = arith.constant 12 : index
    %24 = vector.load %arg7[%c0_15, %c12] : memref<128x36xf32, #tpu.memory_space<vmem>>, vector<128x4xf32>
    tpu.vector_store %arg7[%c0_15, %c12], %23 {strides = array<i32>} : memref<128x36xf32, #tpu.memory_space<vmem>>, vector<128x4xf32>,
    %c1_i32_16 = arith.constant 1 : i32
    %25 = arith.addi %0, %c1_i32_16 : i32
    %c0_17 = arith.constant 0 : index
    %26 = arith.index_cast %25 : i32 to index
    %c1_18 = arith.constant 1 : index
    %c0_19 = arith.constant 0 : index
    %27 = vector.load %arg2[%c0_17, %26, %c1_18, %c0_19] : memref<1x18x18x4xf32, #tpu.memory_space<vmem>>, vector<1x8x16x4xf32>
    %28 = vector.shape_cast %27 : vector<1x8x16x4xf32> to vector<8x16x4xf32>
    %29 = vector.shape_cast %28 : vector<8x16x4xf32> to vector<128x4xf32>
    %c0_20 = arith.constant 0 : index
    %c16 = arith.constant 16 : index
    %30 = vector.load %arg7[%c0_20, %c16] : memref<128x36xf32, #tpu.memory_space<vmem>>, vector<128x4xf32>
    tpu.vector_store %arg7[%c0_20, %c16], %29 {strides = array<i32>} : memref<128x36xf32, #tpu.memory_space<vmem>>, vector<128x4xf32>,
    %c1_i32_21 = arith.constant 1 : i32
    %31 = arith.addi %0, %c1_i32_21 : i32
    %c0_22 = arith.constant 0 : index
    %32 = arith.index_cast %31 : i32 to index
    %c2_23 = arith.constant 2 : index
    %c0_24 = arith.constant 0 : index
    %33 = vector.load %arg2[%c0_22, %32, %c2_23, %c0_24] : memref<1x18x18x4xf32, #tpu.memory_space<vmem>>, vector<1x8x16x4xf32>
    %34 = vector.shape_cast %33 : vector<1x8x16x4xf32> to vector<8x16x4xf32>
    %35 = vector.shape_cast %34 : vector<8x16x4xf32> to vector<128x4xf32>
    %c0_25 = arith.constant 0 : index
    %c20 = arith.constant 20 : index
    %36 = vector.load %arg7[%c0_25, %c20] : memref<128x36xf32, #tpu.memory_space<vmem>>, vector<128x4xf32>
    tpu.vector_store %arg7[%c0_25, %c20], %35 {strides = array<i32>} : memref<128x36xf32, #tpu.memory_space<vmem>>, vector<128x4xf32>,
    %c2_i32 = arith.constant 2 : i32
    %37 = arith.addi %0, %c2_i32 : i32
    %c0_26 = arith.constant 0 : index
    %38 = arith.index_cast %37 : i32 to index
    %c0_27 = arith.constant 0 : index
    %c0_28 = arith.constant 0 : index
    %39 = vector.load %arg2[%c0_26, %38, %c0_27, %c0_28] : memref<1x18x18x4xf32, #tpu.memory_space<vmem>>, vector<1x8x16x4xf32>
    %40 = vector.shape_cast %39 : vector<1x8x16x4xf32> to vector<8x16x4xf32>
    %41 = vector.shape_cast %40 : vector<8x16x4xf32> to vector<128x4xf32>
    %c0_29 = arith.constant 0 : index
    %c24 = arith.constant 24 : index
    %42 = vector.load %arg7[%c0_29, %c24] : memref<128x36xf32, #tpu.memory_space<vmem>>, vector<128x4xf32>
    tpu.vector_store %arg7[%c0_29, %c24], %41 {strides = array<i32>} : memref<128x36xf32, #tpu.memory_space<vmem>>, vector<128x4xf32>,
    %c2_i32_30 = arith.constant 2 : i32
    %43 = arith.addi %0, %c2_i32_30 : i32
    %c0_31 = arith.constant 0 : index
    %44 = arith.index_cast %43 : i32 to index
    %c1_32 = arith.constant 1 : index
    %c0_33 = arith.constant 0 : index
    %45 = vector.load %arg2[%c0_31, %44, %c1_32, %c0_33] : memref<1x18x18x4xf32, #tpu.memory_space<vmem>>, vector<1x8x16x4xf32>
    %46 = vector.shape_cast %45 : vector<1x8x16x4xf32> to vector<8x16x4xf32>
    %47 = vector.shape_cast %46 : vector<8x16x4xf32> to vector<128x4xf32>
    %c0_34 = arith.constant 0 : index
    %c28 = arith.constant 28 : index
    %48 = vector.load %arg7[%c0_34, %c28] : memref<128x36xf32, #tpu.memory_space<vmem>>, vector<128x4xf32>
    tpu.vector_store %arg7[%c0_34, %c28], %47 {strides = array<i32>} : memref<128x36xf32, #tpu.memory_space<vmem>>, vector<128x4xf32>,
    %c2_i32_35 = arith.constant 2 : i32
    %49 = arith.addi %0, %c2_i32_35 : i32
    %c0_36 = arith.constant 0 : index
    %50 = arith.index_cast %49 : i32 to index
    %c2_37 = arith.constant 2 : index
    %c0_38 = arith.constant 0 : index
    %51 = vector.load %arg2[%c0_36, %50, %c2_37, %c0_38] : memref<1x18x18x4xf32, #tpu.memory_space<vmem>>, vector<1x8x16x4xf32>
    %52 = vector.shape_cast %51 : vector<1x8x16x4xf32> to vector<8x16x4xf32>
    %53 = vector.shape_cast %52 : vector<8x16x4xf32> to vector<128x4xf32>
    %c0_39 = arith.constant 0 : index
    %c32 = arith.constant 32 : index
    %54 = vector.load %arg7[%c0_39, %c32] : memref<128x36xf32, #tpu.memory_space<vmem>>, vector<128x4xf32>
    tpu.vector_store %arg7[%c0_39, %c32], %53 {strides = array<i32>} : memref<128x36xf32, #tpu.memory_space<vmem>>, vector<128x4xf32>,
    %c0_40 = arith.constant 0 : index
    %c0_41 = arith.constant 0 : index
    %55 = vector.load %arg7[%c0_40, %c0_41] : memref<128x36xf32, #tpu.memory_space<vmem>>, vector<128x36xf32>
    %c0_42 = arith.constant 0 : index
    %c0_43 = arith.constant 0 : index
    %56 = vector.load %arg3[%c0_42, %c0_43] : memref<36x128xf32, #tpu.memory_space<vmem>>, vector<36x128xf32>
    %cst = arith.constant dense<0.000000e+00> : vector<128x128xf32>
    %57 = tpu.matmul %55, %56, %cst {dimension_numbers = #tpu.dot_dimension_numbers<[1], [0], [0], [1], [0, 0, 1, 1], [], []>} : vector<128x36xf32>, vector<36x128xf32>, vector<128x128xf32> -> vector<128x128xf32>
    %c0_44 = arith.constant 0 : index
    %c0_45 = arith.constant 0 : index
    %58 = vector.load %arg4[%c0_44, %c0_45] : memref<1x128xf32, #tpu.memory_space<vmem>>, vector<1x128xf32>
    %59 = vector.broadcast %58 : vector<1x128xf32> to vector<128x128xf32>
    %60 = arith.mulf %57, %59 : vector<128x128xf32>
    %c0_46 = arith.constant 0 : index
    %c0_47 = arith.constant 0 : index
    %61 = vector.load %arg5[%c0_46, %c0_47] : memref<1x128xf32, #tpu.memory_space<vmem>>, vector<1x128xf32>
    %62 = vector.broadcast %61 : vector<1x128xf32> to vector<128x128xf32>
    %63 = arith.addf %60, %62 : vector<128x128xf32>
    %cst_48 = arith.constant 0.000000e+00 : f32
    %64 = vector.broadcast %cst_48 : f32 to vector<128x128xf32>
    %65 = arith.cmpf oge, %63, %64 : vector<128x128xf32>
    %cst_49 = arith.constant 2.000000e-01 : f32
    %66 = vector.broadcast %cst_49 : f32 to vector<128x128xf32>
    %67 = arith.mulf %66, %63 : vector<128x128xf32>
    %68 = arith.select %65, %63, %67 : vector<128x128xi1>, vector<128x128xf32>
    %69 = vector.shape_cast %68 : vector<128x128xf32> to vector<8x16x128xf32>
    %c0_50 = arith.constant 0 : index
    %c0_51 = arith.constant 0 : index
    %c0_52 = arith.constant 0 : index
    %c0_53 = arith.constant 0 : index
    %70 = vector.load %arg6[%c0_50, %c0_51, %c0_52, %c0_53] : memref<1x8x16x128xf32, #tpu.memory_space<vmem>>, vector<1x8x16x128xf32>
    %71 = vector.shape_cast %70 : vector<1x8x16x128xf32> to vector<8x16x128xf32>
    %72 = vector.shape_cast %69 : vector<8x16x128xf32> to vector<1x8x16x128xf32>
    tpu.vector_store %arg6[%c0_50, %c0_51, %c0_52, %c0_53], %72 {strides = array<i32>} : memref<1x8x16x128xf32, #tpu.memory_space<vmem>>, vector<1x8x16x128xf32>,
    return
  }
  func.func @transform_0(%arg0: i32, %arg1: i32) -> (i32, i32, i32, i32) {
    %c0_i32 = arith.constant 0 : i32
    %c0_i32_0 = arith.constant 0 : i32
    %c0_i32_1 = arith.constant 0 : i32
    %c0_i32_2 = arith.constant 0 : i32
    return %arg0, %c0_i32, %c0_i32_0, %c0_i32_1 : i32, i32, i32, i32
  }
  func.func @transform_1(%arg0: i32, %arg1: i32) -> (i32, i32) {
    %c0_i32 = arith.constant 0 : i32
    %c0_i32_0 = arith.constant 0 : i32
    %c0_i32_1 = arith.constant 0 : i32
    return %c0_i32, %c0_i32_0 : i32, i32
  }
  func.func @transform_2(%arg0: i32, %arg1: i32) -> (i32, i32) {
    %c0_i32 = arith.constant 0 : i32
    %c0_i32_0 = arith.constant 0 : i32
    %c0_i32_1 = arith.constant 0 : i32
    return %c0_i32, %c0_i32_0 : i32, i32
  }
  func.func @transform_3(%arg0: i32, %arg1: i32) -> (i32, i32) {
    %c0_i32 = arith.constant 0 : i32
    %c0_i32_0 = arith.constant 0 : i32
    %c0_i32_1 = arith.constant 0 : i32
    return %c0_i32, %c0_i32_0 : i32, i32
  }
  func.func @transform_4(%arg0: i32, %arg1: i32) -> (i32, i32, i32, i32) {
    %c0_i32 = arith.constant 0 : i32
    %c0_i32_0 = arith.constant 0 : i32
    %c0_i32_1 = arith.constant 0 : i32
    return %arg0, %arg1, %c0_i32, %c0_i32_0 : i32, i32, i32, i32
  }
}

</mosaic_0001>

<llo_original>
// kernel: tpu_custom_call.1
$region0: #{tpu_custom_call.1}
  #allocation0 [shape = 'u32[]', space=smem, size = 0x4, offset = 0x4, fixed_abs, tag = 'smem constant byte address 0x4 - core index']
  #allocation1 [shape = 'u32[72,128]{1,0:T(1,128)}', space=vmem, size = 0x9000, scoped, tag = 'internal scratch']
  #allocation2 [shape = 'f32[128,36]{1,0:T(8,128)}', space=vmem, size = 0x10000, scoped, tag = 'scratch operand']
  %s0 = inlined_call_operand.vmem [shape: f32[2,18,18,4], index: 0, kind: input, shape index: {}]
  %s1 = inlined_call_operand.vmem [shape: f32[36,128], index: 1, kind: input, shape index: {}]
  %s2 = inlined_call_operand.vmem [shape: f32[1,128], index: 2, kind: input, shape index: {}]
  %s3 = inlined_call_operand.vmem [shape: f32[1,128], index: 3, kind: input, shape index: {}]
  %s4 = inlined_call_operand.hbm [shape: f32[2,16,16,128], index: 4, kind: output, shape index: {}]
  %s5 = sld [smem:[#allocation0]]
  $region49: #{tpu_custom_call.1} parent=0
    _
  %s7 = ssub.s32 1, %s5
  %s8 = scalar_select 0, %s7, %s5
  $region1: #{tpu_custom_call.1} parent=0
    #allocation3 [shape = 'u8[131072]{0}', space=vmem, size = 0x20000, scoped, tag = 'output window, operand 0']
    #allocation4 [shape = 's32[2]{0}', space=sflag, size = 0x8, scoped, tag = 'scoped memory for tpu_custom_call.1']
    %9 = vsyncpa [#allocation4], 0
    %s10 = scalar_lea.sflag [#allocation4], 1
    %11 = vsyncpa %s10, 0
    loop: start=0, step=1, limit=6
    $region2: #{tpu_custom_call.1} parent=1 // loop_pre_header
      _
    $region3: #{tpu_custom_call.1} parent=1 // loop_header
      %s13 = sphi 0, %s17
      %p14 = scmp.ge.s32.totalorder %s13, 6
      %s20 = sphi 0, %s32
      %s21 = sphi 0, %s28
      %s22 = sphi 0, %s20
      %s23 = sphi 0, %s21
      %s24 = sphi 0, %s22
      %s25 = sphi 0, %s23
      %s35 = sphi 0, %s37
      %s38 = sphi 0, %s35
      %s39 = sphi 0, %s38
      %s55 = sphi 0, %s39
      %s59 = sphi 0, %s59
      %s61 = sphi 0, %s59
      %s62 = sphi 0, %s61
      %s76 = sphi 0, %s62
      %s80 = sphi 0, %s80
      %s82 = sphi 0, %s80
      %s83 = sphi 0, %s82
      %s97 = sphi 0, %s83
      %s101 = sphi 0, %s101
      %s103 = sphi 0, %s101
      %s104 = sphi 0, %s103
      %s118 = sphi 0, %s104
      %s126 = sphi 0, %s128
      %s129 = sphi 0, %s126
      %s130 = sphi 0, %s129
      %s146 = sphi 0, %s130
    $region4: #{tpu_custom_call.1} parent=1 // loop_header_branch
      %16 = sbr.rel (%p14) target = $region8
    $region5: #{tpu_custom_call.1} parent=1 // loop_body
      %s18 = ssub.s32 %s13, 1
      %s19 = ssub.s32 %s13, 2
      %s26 = sadd.s32 1, %s21
      %p27 = scmp.ge.s32.totalorder %s26, 2
      %s28 = scalar_select %p27, 0, %s26
      %s29 = sadd.s32 1, %s20
      %s30 = scalar_select %p27, %s29, %s20
      %p31 = scmp.ge.s32.totalorder %s30, 2
      %s32 = scalar_select %p31, 0, %s30
      %s33 = ssub.s32 %s20, %s32
      %p34 = scmp.eq.s32.totalorder %s33, 0
      %s36 = sadd.s32 %s35, 1
      %s37 = scalar_select %p34, %s35, %s36
      %p40 = pneg %p34
      %p41 = scmp.eq.s32.totalorder %s13, 3
      %p42 = por %p40, %p41
      %p43 = scmp.ne.s32.totalorder %s35, %s38
      %p44 = scmp.eq.s32.totalorder %s13, 0
      %p45 = por %p43, %p44
      %p46 = scmp.ne.s32.totalorder %s35, %s38
      %p47 = scmp.eq.s32.totalorder %s18, 3
      %p48 = por %p46, %p47
      %p49 = scmp.ne.s32.totalorder %s38, %s39
      %p50 = scmp.eq.s32.totalorder %s18, 0
      %p51 = por %p49, %p50
      %p52 = scmp.ne.s32.totalorder %s38, %s39
      %p53 = scmp.eq.s32.totalorder %s19, 3
      %p54 = por %p52, %p53
      %p56 = scmp.ne.s32.totalorder %s39, %s55
      %p57 = scmp.eq.s32.totalorder %s19, 0
      %p58 = por %p56, %p57
      %s60 = sadd.s32 %s59, 1
      %p63 = scmp.eq.s32.totalorder %s13, 3
      %p64 = scmp.ne.s32.totalorder %s59, %s61
      %p65 = scmp.eq.s32.totalorder %s13, 0
      %p66 = por %p64, %p65
      %p67 = scmp.ne.s32.totalorder %s59, %s61
      %p68 = scmp.eq.s32.totalorder %s18, 3
      %p69 = por %p67, %p68
      %p70 = scmp.ne.s32.totalorder %s61, %s62
      %p71 = scmp.eq.s32.totalorder %s18, 0
      %p72 = por %p70, %p71
      %p73 = scmp.ne.s32.totalorder %s61, %s62
      %p74 = scmp.eq.s32.totalorder %s19, 3
      %p75 = por %p73, %p74
      %p77 = scmp.ne.s32.totalorder %s62, %s76
      %p78 = scmp.eq.s32.totalorder %s19, 0
      %p79 = por %p77, %p78
      %s81 = sadd.s32 %s80, 1
      %p84 = scmp.eq.s32.totalorder %s13, 3
      %p85 = scmp.ne.s32.totalorder %s80, %s82
      %p86 = scmp.eq.s32.totalorder %s13, 0
      %p87 = por %p85, %p86
      %p88 = scmp.ne.s32.totalorder %s80, %s82
      %p89 = scmp.eq.s32.totalorder %s18, 3
      %p90 = por %p88, %p89
      %p91 = scmp.ne.s32.totalorder %s82, %s83
      %p92 = scmp.eq.s32.totalorder %s18, 0
      %p93 = por %p91, %p92
      %p94 = scmp.ne.s32.totalorder %s82, %s83
      %p95 = scmp.eq.s32.totalorder %s19, 3
      %p96 = por %p94, %p95
      %p98 = scmp.ne.s32.totalorder %s83, %s97
      %p99 = scmp.eq.s32.totalorder %s19, 0
      %p100 = por %p98, %p99
      %s102 = sadd.s32 %s101, 1
      %p105 = scmp.eq.s32.totalorder %s13, 3
      %p106 = scmp.ne.s32.totalorder %s101, %s103
      %p107 = scmp.eq.s32.totalorder %s13, 0
      %p108 = por %p106, %p107
      %p109 = scmp.ne.s32.totalorder %s101, %s103
      %p110 = scmp.eq.s32.totalorder %s18, 3
      %p111 = por %p109, %p110
      %p112 = scmp.ne.s32.totalorder %s103, %s104
      %p113 = scmp.eq.s32.totalorder %s18, 0
      %p114 = por %p112, %p113
      %p115 = scmp.ne.s32.totalorder %s103, %s104
      %p116 = scmp.eq.s32.totalorder %s19, 3
      %p117 = por %p115, %p116
      %p119 = scmp.ne.s32.totalorder %s104, %s118
      %p120 = scmp.eq.s32.totalorder %s19, 0
      %p121 = por %p119, %p120
      %s122 = ssub.s32 %s20, %s32
      %s123 = ssub.s32 %s21, %s28
      %s124 = sor.u32 %s122, %s123
      %p125 = scmp.eq.s32.totalorder %s124, 0
      %s127 = sadd.s32 %s126, 1
      %s128 = scalar_select %p125, %s126, %s127
      %p131 = pneg %p125
      %p132 = scmp.eq.s32.totalorder %s13, 3
      %p133 = por %p131, %p132
      %p134 = scmp.ne.s32.totalorder %s126, %s129
      %p135 = scmp.eq.s32.totalorder %s13, 0
      %p136 = por %p134, %p135
      %p137 = scmp.ne.s32.totalorder %s126, %s129
      %p138 = scmp.eq.s32.totalorder %s18, 3
      %p139 = por %p137, %p138
      %p140 = scmp.ne.s32.totalorder %s129, %s130
      %p141 = scmp.eq.s32.totalorder %s18, 0
      %p142 = por %p140, %p141
      %p143 = scmp.ne.s32.totalorder %s129, %s130
      %p144 = scmp.eq.s32.totalorder %s19, 3
      %p145 = por %p143, %p144
      %p147 = scmp.ne.s32.totalorder %s130, %s146
      %p148 = scmp.eq.s32.totalorder %s19, 0
      %p149 = por %p147, %p148
      %p150 = scmp.le.s32.totalorder 1, %s13
      %p151 = scmp.lt.s32.totalorder %s13, 5
      %p152 = pnand %p150, %p151
      %p153 = pneg %p152
      // Predicated region
      $region9: #{tpu_custom_call.1} parent=5 // pred_check
        _
      $region10: #{tpu_custom_call.1} parent=5 // pred_check_branch
        %155 = sbr.rel (%p152) target = $region12
      $region11: #{tpu_custom_call.1} parent=5 // pred_region
        %s156 = ssub.s32 %s13, 1
        // Predicated region
        $region13: #{tpu_custom_call.1} parent=11 // pred_check
          %p157 = pneg %p72
        $region14: #{tpu_custom_call.1} parent=11 // pred_check_branch
          %159 = sbr.rel (%p157) target = $region16
        $region15: #{tpu_custom_call.1} parent=11 // pred_region
          _
        $region16: #{tpu_custom_call.1} parent=11 // pred_fallthru
          _
        // Predicated region
        $region17: #{tpu_custom_call.1} parent=11 // pred_check
          %p160 = pneg %p93
        $region18: #{tpu_custom_call.1} parent=11 // pred_check_branch
          %162 = sbr.rel (%p160) target = $region20
        $region19: #{tpu_custom_call.1} parent=11 // pred_region
          _
        $region20: #{tpu_custom_call.1} parent=11 // pred_fallthru
          _
        // Predicated region
        $region21: #{tpu_custom_call.1} parent=11 // pred_check
          %p163 = pneg %p114
        $region22: #{tpu_custom_call.1} parent=11 // pred_check_branch
          %165 = sbr.rel (%p163) target = $region24
        $region23: #{tpu_custom_call.1} parent=11 // pred_region
          _
        $region24: #{tpu_custom_call.1} parent=11 // pred_fallthru
          _
      $region12: #{tpu_custom_call.1} parent=5 // pred_fallthru
        _
      %p166 = scmp.lt.s32.totalorder %s13, 4
      // Predicated region
      $region25: #{tpu_custom_call.1} parent=5 // pred_check
        %p167 = pneg %p166
      $region26: #{tpu_custom_call.1} parent=5 // pred_check_branch
        %169 = sbr.rel (%p167) target = $region28
      $region27: #{tpu_custom_call.1} parent=5 // pred_region
        // Predicated region
        $region29: #{tpu_custom_call.1} parent=27 // pred_check
          %p170 = pneg %p45
        $region30: #{tpu_custom_call.1} parent=27 // pred_check_branch
          %172 = sbr.rel (%p170) target = $region32
        $region31: #{tpu_custom_call.1} parent=27 // pred_region
          %p173 = scmp.lt.s32.totalorder %s20, 1
          %s174 = scalar_select %p173, %s20, 1
          %s175 = smul.addr %s174, 54
          %s176 = smul.addr %s175, 8
          %s177 = scalar_lea.vmem %s0, %s176
        $region32: #{tpu_custom_call.1} parent=27 // pred_fallthru
          _
      $region28: #{tpu_custom_call.1} parent=5 // pred_fallthru
        _
      %p178 = scmp.le.s32.totalorder 1, %s13
      %p179 = scmp.lt.s32.totalorder %s13, 5
      %p180 = pnand %p178, %p179
      %p181 = pneg %p180
      // Predicated region
      $region33: #{tpu_custom_call.1} parent=5 // pred_check
        _
      $region34: #{tpu_custom_call.1} parent=5 // pred_check_branch
        %183 = sbr.rel (%p180) target = $region36
      $region35: #{tpu_custom_call.1} parent=5 // pred_region
        %s184 = ssub.s32 %s13, 1
        %p185 = scmp.lt.s32.totalorder %s22, 1
        %s186 = scalar_select %p185, %s22, 1
        %s187 = smul.addr %s186, 54
        %s188 = smul.addr %s187, 8
        %s189 = scalar_lea.vmem %s0, %s188
        %p190 = pneg %p51
        %p191 = pneg %p48
        %p192 = pneg %p72
        %p193 = pneg %p69
        %p194 = pneg %p93
        %p195 = pneg %p90
        %p196 = pneg %p114
        %p197 = pneg %p111
        %p198 = pneg %p142
        %p199 = pneg %p139
        %s200 = sand.u32 %s129, 1
        %s201 = scalar_lea.sflag [#allocation4], %s200
        %s202 = sand.u32 %s129, 1
        %s203 = smul.addr %s202, 128
        %s204 = scalar_lea.vmem [#allocation3], %s203
        %p205 = scmp.lt.s32.totalorder %s22, 1
        %s206 = scalar_select %p205, %s22, 1
        %s207 = smul.addr %s206, 54
        %s208 = smul.addr %s207, 8
        %s209 = scalar_lea.vmem %s0, %s208
        %s210 = smul.u32 8, %s23
        %s211 = smul.u32 %s23, 8
        %s212 = smul.u32 %s211, 24
        %s213 = scalar_lea.vmem %s209, %s212
        %v214 = vld [vmem:[%s213] sm:$0xff]
        %v215 = vld [vmem:[%s213 + $0x8] sm:$0xff]
        %v216 = vld [vmem:[%s213 + $0x18] sm:$0xff]
        %v217 = vld [vmem:[%s213 + $0x20] sm:$0xff]
        %v218 = vld [vmem:[%s213 + $0x30] sm:$0xff]
        %v219 = vld [vmem:[%s213 + $0x38] sm:$0xff]
        %v220 = vld [vmem:[%s213 + $0x48] sm:$0xff]
        %v221 = vld [vmem:[%s213 + $0x50] sm:$0xff]
        %v222 = vld [vmem:[%s213 + $0x60] sm:$0xff]
        %v223 = vld [vmem:[%s213 + $0x68] sm:$0xff]
        %v224 = vld [vmem:[%s213 + $0x78] sm:$0xff]
        %v225 = vld [vmem:[%s213 + $0x80] sm:$0xff]
        %v226 = vld [vmem:[%s213 + $0x90] sm:$0xff]
        %v227 = vld [vmem:[%s213 + $0x98] sm:$0xff]
        %v228 = vld [vmem:[%s213 + $0xa8] sm:$0xff]
        %v229 = vld [vmem:[%s213 + $0xb0] sm:$0xff]
        %vm230 = vcmask 31744
        %231 = vst.msk [vmem:[#allocation2] sm:$0xff] %vm230, %v214
        %232 = vst.msk [vmem:[#allocation2 + $0x8] sm:$0xff] %vm230, %v215
        %233 = vst.msk [vmem:[#allocation2 + $0x10] sm:$0xff] %vm230, %v216
        %234 = vst.msk [vmem:[#allocation2 + $0x18] sm:$0xff] %vm230, %v217
        %235 = vst.msk [vmem:[#allocation2 + $0x20] sm:$0xff] %vm230, %v218
        %236 = vst.msk [vmem:[#allocation2 + $0x28] sm:$0xff] %vm230, %v219
        %237 = vst.msk [vmem:[#allocation2 + $0x30] sm:$0xff] %vm230, %v220
        %238 = vst.msk [vmem:[#allocation2 + $0x38] sm:$0xff] %vm230, %v221
        %239 = vst.msk [vmem:[#allocation2 + $0x40] sm:$0xff] %vm230, %v222
        %240 = vst.msk [vmem:[#allocation2 + $0x48] sm:$0xff] %vm230, %v223
        %241 = vst.msk [vmem:[#allocation2 + $0x50] sm:$0xff] %vm230, %v224
        %242 = vst.msk [vmem:[#allocation2 + $0x58] sm:$0xff] %vm230, %v225
        %243 = vst.msk [vmem:[#allocation2 + $0x60] sm:$0xff] %vm230, %v226
        %244 = vst.msk [vmem:[#allocation2 + $0x68] sm:$0xff] %vm230, %v227
        %245 = vst.msk [vmem:[#allocation2 + $0x70] sm:$0xff] %vm230, %v228
        %246 = vst.msk [vmem:[#allocation2 + $0x78] sm:$0xff] %vm230, %v229
        %v247 = vld [vmem:[%s213 + $0x1] sm:$0xff]
        %v248 = vld [vmem:[%s213 + $0x9] sm:$0xff]
        %v249 = vld [vmem:[%s213 + $0x19] sm:$0xff]
        %v250 = vld [vmem:[%s213 + $0x21] sm:$0xff]
        %v251 = vld [vmem:[%s213 + $0x31] sm:$0xff]
        %v252 = vld [vmem:[%s213 + $0x39] sm:$0xff]
        %v253 = vld [vmem:[%s213 + $0x49] sm:$0xff]
        %v254 = vld [vmem:[%s213 + $0x51] sm:$0xff]
        %v255 = vld [vmem:[%s213 + $0x61] sm:$0xff]
        %v256 = vld [vmem:[%s213 + $0x69] sm:$0xff]
        %v257 = vld [vmem:[%s213 + $0x79] sm:$0xff]
        %v258 = vld [vmem:[%s213 + $0x81] sm:$0xff]
        %v259 = vld [vmem:[%s213 + $0x91] sm:$0xff]
        %v260 = vld [vmem:[%s213 + $0x99] sm:$0xff]
        %v261 = vld [vmem:[%s213 + $0xa9] sm:$0xff]
        %v262 = vld [vmem:[%s213 + $0xb1] sm:$0xff]
        %279 = vrot.lane.b32.xlu0 %v247, 4
        %v280 = vpop.permute.xlu0 %279
        %281 = vrot.lane.b32.xlu0 %v248, 4
        %v282 = vpop.permute.xlu0 %281
        %283 = vrot.lane.b32.xlu0 %v249, 4
        %v284 = vpop.permute.xlu0 %283
        %285 = vrot.lane.b32.xlu0 %v250, 4
        %v286 = vpop.permute.xlu0 %285
        %287 = vrot.lane.b32.xlu0 %v251, 4
        %v288 = vpop.permute.xlu0 %287
        %289 = vrot.lane.b32.xlu0 %v252, 4
        %v290 = vpop.permute.xlu0 %289
        %291 = vrot.lane.b32.xlu0 %v253, 4
        %v292 = vpop.permute.xlu0 %291
        %293 = vrot.lane.b32.xlu0 %v254, 4
        %v294 = vpop.permute.xlu0 %293
        %295 = vrot.lane.b32.xlu0 %v255, 4
        %v296 = vpop.permute.xlu0 %295
        %297 = vrot.lane.b32.xlu0 %v256, 4
        %v298 = vpop.permute.xlu0 %297
        %299 = vrot.lane.b32.xlu0 %v257, 4
        %v300 = vpop.permute.xlu0 %299
        %301 = vrot.lane.b32.xlu0 %v258, 4
        %v302 = vpop.permute.xlu0 %301
        %303 = vrot.lane.b32.xlu0 %v259, 4
        %v304 = vpop.permute.xlu0 %303
        %305 = vrot.lane.b32.xlu0 %v260, 4
        %v306 = vpop.permute.xlu0 %305
        %307 = vrot.lane.b32.xlu0 %v261, 4
        %v308 = vpop.permute.xlu0 %307
        %309 = vrot.lane.b32.xlu0 %v262, 4
        %v310 = vpop.permute.xlu0 %309
        %vm327 = vcmask 64544
        %328 = vst.msk [vmem:[#allocation2] sm:$0xff] %vm327, %v280
        %329 = vst.msk [vmem:[#allocation2 + $0x8] sm:$0xff] %vm327, %v282
        %330 = vst.msk [vmem:[#allocation2 + $0x10] sm:$0xff] %vm327, %v284
        %331 = vst.msk [vmem:[#allocation2 + $0x18] sm:$0xff] %vm327, %v286
        %332 = vst.msk [vmem:[#allocation2 + $0x20] sm:$0xff] %vm327, %v288
        %333 = vst.msk [vmem:[#allocation2 + $0x28] sm:$0xff] %vm327, %v290
        %334 = vst.msk [vmem:[#allocation2 + $0x30] sm:$0xff] %vm327, %v292
        %335 = vst.msk [vmem:[#allocation2 + $0x38] sm:$0xff] %vm327, %v294
        %336 = vst.msk [vmem:[#allocation2 + $0x40] sm:$0xff] %vm327, %v296
        %337 = vst.msk [vmem:[#allocation2 + $0x48] sm:$0xff] %vm327, %v298
        %338 = vst.msk [vmem:[#allocation2 + $0x50] sm:$0xff] %vm327, %v300
        %339 = vst.msk [vmem:[#allocation2 + $0x58] sm:$0xff] %vm327, %v302
        %340 = vst.msk [vmem:[#allocation2 + $0x60] sm:$0xff] %vm327, %v304
        %341 = vst.msk [vmem:[#allocation2 + $0x68] sm:$0xff] %vm327, %v306
        %342 = vst.msk [vmem:[#allocation2 + $0x70] sm:$0xff] %vm327, %v308
        %343 = vst.msk [vmem:[#allocation2 + $0x78] sm:$0xff] %vm327, %v310
        %v344 = vld [vmem:[%s213 + $0x2] sm:$0xff]
        %v345 = vld [vmem:[%s213 + $0xa] sm:$0xff]
        %v346 = vld [vmem:[%s213 + $0x1a] sm:$0xff]
        %v347 = vld [vmem:[%s213 + $0x22] sm:$0xff]
        %v348 = vld [vmem:[%s213 + $0x32] sm:$0xff]
        %v349 = vld [vmem:[%s213 + $0x3a] sm:$0xff]
        %v350 = vld [vmem:[%s213 + $0x4a] sm:$0xff]
        %v351 = vld [vmem:[%s213 + $0x52] sm:$0xff]
        %v352 = vld [vmem:[%s213 + $0x62] sm:$0xff]
        %v353 = vld [vmem:[%s213 + $0x6a] sm:$0xff]
        %v354 = vld [vmem:[%s213 + $0x7a] sm:$0xff]
        %v355 = vld [vmem:[%s213 + $0x82] sm:$0xff]
        %v356 = vld [vmem:[%s213 + $0x92] sm:$0xff]
        %v357 = vld [vmem:[%s213 + $0x9a] sm:$0xff]
        %v358 = vld [vmem:[%s213 + $0xaa] sm:$0xff]
        %v359 = vld [vmem:[%s213 + $0xb2] sm:$0xff]
        %376 = vrot.lane.b32.xlu0 %v344, 8
        %v377 = vpop.permute.xlu0 %376
        %378 = vrot.lane.b32.xlu0 %v345, 8
        %v379 = vpop.permute.xlu0 %378
        %380 = vrot.lane.b32.xlu0 %v346, 8
        %v381 = vpop.permute.xlu0 %380
        %382 = vrot.lane.b32.xlu0 %v347, 8
        %v383 = vpop.permute.xlu0 %382
        %384 = vrot.lane.b32.xlu0 %v348, 8
        %v385 = vpop.permute.xlu0 %384
        %386 = vrot.lane.b32.xlu0 %v349, 8
        %v387 = vpop.permute.xlu0 %386
        %388 = vrot.lane.b32.xlu0 %v350, 8
        %v389 = vpop.permute.xlu0 %388
        %390 = vrot.lane.b32.xlu0 %v351, 8
        %v391 = vpop.permute.xlu0 %390
        %392 = vrot.lane.b32.xlu0 %v352, 8
        %v393 = vpop.permute.xlu0 %392
        %394 = vrot.lane.b32.xlu0 %v353, 8
        %v395 = vpop.permute.xlu0 %394
        %396 = vrot.lane.b32.xlu0 %v354, 8
        %v397 = vpop.permute.xlu0 %396
        %398 = vrot.lane.b32.xlu0 %v355, 8
        %v399 = vpop.permute.xlu0 %398
        %400 = vrot.lane.b32.xlu0 %v356, 8
        %v401 = vpop.permute.xlu0 %400
        %402 = vrot.lane.b32.xlu0 %v357, 8
        %v403 = vpop.permute.xlu0 %402
        %404 = vrot.lane.b32.xlu0 %v358, 8
        %v405 = vpop.permute.xlu0 %404
        %406 = vrot.lane.b32.xlu0 %v359, 8
        %v407 = vpop.permute.xlu0 %406
        %vm424 = vcmask 97344
        %425 = vst.msk [vmem:[#allocation2] sm:$0xff] %vm424, %v377
        %426 = vst.msk [vmem:[#allocation2 + $0x8] sm:$0xff] %vm424, %v379
        %427 = vst.msk [vmem:[#allocation2 + $0x10] sm:$0xff] %vm424, %v381
        %428 = vst.msk [vmem:[#allocation2 + $0x18] sm:$0xff] %vm424, %v383
        %429 = vst.msk [vmem:[#allocation2 + $0x20] sm:$0xff] %vm424, %v385
        %430 = vst.msk [vmem:[#allocation2 + $0x28] sm:$0xff] %vm424, %v387
        %431 = vst.msk [vmem:[#allocation2 + $0x30] sm:$0xff] %vm424, %v389
        %432 = vst.msk [vmem:[#allocation2 + $0x38] sm:$0xff] %vm424, %v391
        %433 = vst.msk [vmem:[#allocation2 + $0x40] sm:$0xff] %vm424, %v393
        %434 = vst.msk [vmem:[#allocation2 + $0x48] sm:$0xff] %vm424, %v395
        %435 = vst.msk [vmem:[#allocation2 + $0x50] sm:$0xff] %vm424, %v397
        %436 = vst.msk [vmem:[#allocation2 + $0x58] sm:$0xff] %vm424, %v399
        %437 = vst.msk [vmem:[#allocation2 + $0x60] sm:$0xff] %vm424, %v401
        %438 = vst.msk [vmem:[#allocation2 + $0x68] sm:$0xff] %vm424, %v403
        %439 = vst.msk [vmem:[#allocation2 + $0x70] sm:$0xff] %vm424, %v405
        %440 = vst.msk [vmem:[#allocation2 + $0x78] sm:$0xff] %vm424, %v407
        %s441 = sadd.s32 %s211, 1
        %s442 = smul.u32 %s441, 24
        %s443 = scalar_lea.vmem %s209, %s442
        %v444 = vld [vmem:[%s443] sm:$0xff]
        %v445 = vld [vmem:[%s443 + $0x8] sm:$0xff]
        %v446 = vld [vmem:[%s443 + $0x18] sm:$0xff]
        %v447 = vld [vmem:[%s443 + $0x20] sm:$0xff]
        %v448 = vld [vmem:[%s443 + $0x30] sm:$0xff]
        %v449 = vld [vmem:[%s443 + $0x38] sm:$0xff]
        %v450 = vld [vmem:[%s443 + $0x48] sm:$0xff]
        %v451 = vld [vmem:[%s443 + $0x50] sm:$0xff]
        %v452 = vld [vmem:[%s443 + $0x60] sm:$0xff]
        %v453 = vld [vmem:[%s443 + $0x68] sm:$0xff]
        %v454 = vld [vmem:[%s443 + $0x78] sm:$0xff]
        %v455 = vld [vmem:[%s443 + $0x80] sm:$0xff]
        %v456 = vld [vmem:[%s443 + $0x90] sm:$0xff]
        %v457 = vld [vmem:[%s443 + $0x98] sm:$0xff]
        %v458 = vld [vmem:[%s443 + $0xa8] sm:$0xff]
        %v459 = vld [vmem:[%s443 + $0xb0] sm:$0xff]
        %476 = vrot.lane.b32.xlu0 %v444, 12
        %v477 = vpop.permute.xlu0 %476
        %478 = vrot.lane.b32.xlu0 %v445, 12
        %v479 = vpop.permute.xlu0 %478
        %480 = vrot.lane.b32.xlu0 %v446, 12
        %v481 = vpop.permute.xlu0 %480
        %482 = vrot.lane.b32.xlu0 %v447, 12
        %v483 = vpop.permute.xlu0 %482
        %484 = vrot.lane.b32.xlu0 %v448, 12
        %v485 = vpop.permute.xlu0 %484
        %486 = vrot.lane.b32.xlu0 %v449, 12
        %v487 = vpop.permute.xlu0 %486
        %488 = vrot.lane.b32.xlu0 %v450, 12
        %v489 = vpop.permute.xlu0 %488
        %490 = vrot.lane.b32.xlu0 %v451, 12
        %v491 = vpop.permute.xlu0 %490
        %492 = vrot.lane.b32.xlu0 %v452, 12
        %v493 = vpop.permute.xlu0 %492
        %494 = vrot.lane.b32.xlu0 %v453, 12
        %v495 = vpop.permute.xlu0 %494
        %496 = vrot.lane.b32.xlu0 %v454, 12
        %v497 = vpop.permute.xlu0 %496
        %498 = vrot.lane.b32.xlu0 %v455, 12
        %v499 = vpop.permute.xlu0 %498
        %500 = vrot.lane.b32.xlu0 %v456, 12
        %v501 = vpop.permute.xlu0 %500
        %502 = vrot.lane.b32.xlu0 %v457, 12
        %v503 = vpop.permute.xlu0 %502
        %504 = vrot.lane.b32.xlu0 %v458, 12
        %v505 = vpop.permute.xlu0 %504
        %506 = vrot.lane.b32.xlu0 %v459, 12
        %v507 = vpop.permute.xlu0 %506
        %vm524 = vcmask 130144
        %525 = vst.msk [vmem:[#allocation2] sm:$0xff] %vm524, %v477
        %526 = vst.msk [vmem:[#allocation2 + $0x8] sm:$0xff] %vm524, %v479
        %527 = vst.msk [vmem:[#allocation2 + $0x10] sm:$0xff] %vm524, %v481
        %528 = vst.msk [vmem:[#allocation2 + $0x18] sm:$0xff] %vm524, %v483
        %529 = vst.msk [vmem:[#allocation2 + $0x20] sm:$0xff] %vm524, %v485
        %530 = vst.msk [vmem:[#allocation2 + $0x28] sm:$0xff] %vm524, %v487
        %531 = vst.msk [vmem:[#allocation2 + $0x30] sm:$0xff] %vm524, %v489
        %532 = vst.msk [vmem:[#allocation2 + $0x38] sm:$0xff] %vm524, %v491
        %533 = vst.msk [vmem:[#allocation2 + $0x40] sm:$0xff] %vm524, %v493
        %534 = vst.msk [vmem:[#allocation2 + $0x48] sm:$0xff] %vm524, %v495
        %535 = vst.msk [vmem:[#allocation2 + $0x50] sm:$0xff] %vm524, %v497
        %536 = vst.msk [vmem:[#allocation2 + $0x58] sm:$0xff] %vm524, %v499
        %537 = vst.msk [vmem:[#allocation2 + $0x60] sm:$0xff] %vm524, %v501
        %538 = vst.msk [vmem:[#allocation2 + $0x68] sm:$0xff] %vm524, %v503
        %539 = vst.msk [vmem:[#allocation2 + $0x70] sm:$0xff] %vm524, %v505
        %540 = vst.msk [vmem:[#allocation2 + $0x78] sm:$0xff] %vm524, %v507
        %v541 = vld [vmem:[%s443 + $0x1] sm:$0xff]
        %v542 = vld [vmem:[%s443 + $0x9] sm:$0xff]
        %v543 = vld [vmem:[%s443 + $0x19] sm:$0xff]
        %v544 = vld [vmem:[%s443 + $0x21] sm:$0xff]
        %v545 = vld [vmem:[%s443 + $0x31] sm:$0xff]
        %v546 = vld [vmem:[%s443 + $0x39] sm:$0xff]
        %v547 = vld [vmem:[%s443 + $0x49] sm:$0xff]
        %v548 = vld [vmem:[%s443 + $0x51] sm:$0xff]
        %v549 = vld [vmem:[%s443 + $0x61] sm:$0xff]
        %v550 = vld [vmem:[%s443 + $0x69] sm:$0xff]
        %v551 = vld [vmem:[%s443 + $0x79] sm:$0xff]
        %v552 = vld [vmem:[%s443 + $0x81] sm:$0xff]
        %v553 = vld [vmem:[%s443 + $0x91] sm:$0xff]
        %v554 = vld [vmem:[%s443 + $0x99] sm:$0xff]
        %v555 = vld [vmem:[%s443 + $0xa9] sm:$0xff]
        %v556 = vld [vmem:[%s443 + $0xb1] sm:$0xff]
        %573 = vrot.lane.b32.xlu0 %v541, 16
        %v574 = vpop.permute.xlu0 %573
        %575 = vrot.lane.b32.xlu0 %v542, 16
        %v576 = vpop.permute.xlu0 %575
        %577 = vrot.lane.b32.xlu0 %v543, 16
        %v578 = vpop.permute.xlu0 %577
        %579 = vrot.lane.b32.xlu0 %v544, 16
        %v580 = vpop.permute.xlu0 %579
        %581 = vrot.lane.b32.xlu0 %v545, 16
        %v582 = vpop.permute.xlu0 %581
        %583 = vrot.lane.b32.xlu0 %v546, 16
        %v584 = vpop.permute.xlu0 %583
        %585 = vrot.lane.b32.xlu0 %v547, 16
        %v586 = vpop.permute.xlu0 %585
        %587 = vrot.lane.b32.xlu0 %v548, 16
        %v588 = vpop.permute.xlu0 %587
        %589 = vrot.lane.b32.xlu0 %v549, 16
        %v590 = vpop.permute.xlu0 %589
        %591 = vrot.lane.b32.xlu0 %v550, 16
        %v592 = vpop.permute.xlu0 %591
        %593 = vrot.lane.b32.xlu0 %v551, 16
        %v594 = vpop.permute.xlu0 %593
        %595 = vrot.lane.b32.xlu0 %v552, 16
        %v596 = vpop.permute.xlu0 %595
        %597 = vrot.lane.b32.xlu0 %v553, 16
        %v598 = vpop.permute.xlu0 %597
        %599 = vrot.lane.b32.xlu0 %v554, 16
        %v600 = vpop.permute.xlu0 %599
        %601 = vrot.lane.b32.xlu0 %v555, 16
        %v602 = vpop.permute.xlu0 %601
        %603 = vrot.lane.b32.xlu0 %v556, 16
        %v604 = vpop.permute.xlu0 %603
        %vm621 = vcmask 162944
        %622 = vst.msk [vmem:[#allocation2] sm:$0xff] %vm621, %v574
        %623 = vst.msk [vmem:[#allocation2 + $0x8] sm:$0xff] %vm621, %v576
        %624 = vst.msk [vmem:[#allocation2 + $0x10] sm:$0xff] %vm621, %v578
        %625 = vst.msk [vmem:[#allocation2 + $0x18] sm:$0xff] %vm621, %v580
        %626 = vst.msk [vmem:[#allocation2 + $0x20] sm:$0xff] %vm621, %v582
        %627 = vst.msk [vmem:[#allocation2 + $0x28] sm:$0xff] %vm621, %v584
        %628 = vst.msk [vmem:[#allocation2 + $0x30] sm:$0xff] %vm621, %v586
        %629 = vst.msk [vmem:[#allocation2 + $0x38] sm:$0xff] %vm621, %v588
        %630 = vst.msk [vmem:[#allocation2 + $0x40] sm:$0xff] %vm621, %v590
        %631 = vst.msk [vmem:[#allocation2 + $0x48] sm:$0xff] %vm621, %v592
        %632 = vst.msk [vmem:[#allocation2 + $0x50] sm:$0xff] %vm621, %v594
        %633 = vst.msk [vmem:[#allocation2 + $0x58] sm:$0xff] %vm621, %v596
        %634 = vst.msk [vmem:[#allocation2 + $0x60] sm:$0xff] %vm621, %v598
        %635 = vst.msk [vmem:[#allocation2 + $0x68] sm:$0xff] %vm621, %v600
        %636 = vst.msk [vmem:[#allocation2 + $0x70] sm:$0xff] %vm621, %v602
        %637 = vst.msk [vmem:[#allocation2 + $0x78] sm:$0xff] %vm621, %v604
        %v638 = vld [vmem:[%s443 + $0x2] sm:$0xff]
        %v639 = vld [vmem:[%s443 + $0xa] sm:$0xff]
        %v640 = vld [vmem:[%s443 + $0x1a] sm:$0xff]
        %v641 = vld [vmem:[%s443 + $0x22] sm:$0xff]
        %v642 = vld [vmem:[%s443 + $0x32] sm:$0xff]
        %v643 = vld [vmem:[%s443 + $0x3a] sm:$0xff]
        %v644 = vld [vmem:[%s443 + $0x4a] sm:$0xff]
        %v645 = vld [vmem:[%s443 + $0x52] sm:$0xff]
        %v646 = vld [vmem:[%s443 + $0x62] sm:$0xff]
        %v647 = vld [vmem:[%s443 + $0x6a] sm:$0xff]
        %v648 = vld [vmem:[%s443 + $0x7a] sm:$0xff]
        %v649 = vld [vmem:[%s443 + $0x82] sm:$0xff]
        %v650 = vld [vmem:[%s443 + $0x92] sm:$0xff]
        %v651 = vld [vmem:[%s443 + $0x9a] sm:$0xff]
        %v652 = vld [vmem:[%s443 + $0xaa] sm:$0xff]
        %v653 = vld [vmem:[%s443 + $0xb2] sm:$0xff]
        %670 = vrot.lane.b32.xlu0 %v638, 20
        %v671 = vpop.permute.xlu0 %670
        %672 = vrot.lane.b32.xlu0 %v639, 20
        %v673 = vpop.permute.xlu0 %672
        %674 = vrot.lane.b32.xlu0 %v640, 20
        %v675 = vpop.permute.xlu0 %674
        %676 = vrot.lane.b32.xlu0 %v641, 20
        %v677 = vpop.permute.xlu0 %676
        %678 = vrot.lane.b32.xlu0 %v642, 20
        %v679 = vpop.permute.xlu0 %678
        %680 = vrot.lane.b32.xlu0 %v643, 20
        %v681 = vpop.permute.xlu0 %680
        %682 = vrot.lane.b32.xlu0 %v644, 20
        %v683 = vpop.permute.xlu0 %682
        %684 = vrot.lane.b32.xlu0 %v645, 20
        %v685 = vpop.permute.xlu0 %684
        %686 = vrot.lane.b32.xlu0 %v646, 20
        %v687 = vpop.permute.xlu0 %686
        %688 = vrot.lane.b32.xlu0 %v647, 20
        %v689 = vpop.permute.xlu0 %688
        %690 = vrot.lane.b32.xlu0 %v648, 20
        %v691 = vpop.permute.xlu0 %690
        %692 = vrot.lane.b32.xlu0 %v649, 20
        %v693 = vpop.permute.xlu0 %692
        %694 = vrot.lane.b32.xlu0 %v650, 20
        %v695 = vpop.permute.xlu0 %694
        %696 = vrot.lane.b32.xlu0 %v651, 20
        %v697 = vpop.permute.xlu0 %696
        %698 = vrot.lane.b32.xlu0 %v652, 20
        %v699 = vpop.permute.xlu0 %698
        %700 = vrot.lane.b32.xlu0 %v653, 20
        %v701 = vpop.permute.xlu0 %700
        %vm718 = vcmask 195744
        %719 = vst.msk [vmem:[#allocation2] sm:$0xff] %vm718, %v671
        %720 = vst.msk [vmem:[#allocation2 + $0x8] sm:$0xff] %vm718, %v673
        %721 = vst.msk [vmem:[#allocation2 + $0x10] sm:$0xff] %vm718, %v675
        %722 = vst.msk [vmem:[#allocation2 + $0x18] sm:$0xff] %vm718, %v677
        %723 = vst.msk [vmem:[#allocation2 + $0x20] sm:$0xff] %vm718, %v679
        %724 = vst.msk [vmem:[#allocation2 + $0x28] sm:$0xff] %vm718, %v681
        %725 = vst.msk [vmem:[#allocation2 + $0x30] sm:$0xff] %vm718, %v683
        %726 = vst.msk [vmem:[#allocation2 + $0x38] sm:$0xff] %vm718, %v685
        %727 = vst.msk [vmem:[#allocation2 + $0x40] sm:$0xff] %vm718, %v687
        %728 = vst.msk [vmem:[#allocation2 + $0x48] sm:$0xff] %vm718, %v689
        %729 = vst.msk [vmem:[#allocation2 + $0x50] sm:$0xff] %vm718, %v691
        %730 = vst.msk [vmem:[#allocation2 + $0x58] sm:$0xff] %vm718, %v693
        %731 = vst.msk [vmem:[#allocation2 + $0x60] sm:$0xff] %vm718, %v695
        %732 = vst.msk [vmem:[#allocation2 + $0x68] sm:$0xff] %vm718, %v697
        %733 = vst.msk [vmem:[#allocation2 + $0x70] sm:$0xff] %vm718, %v699
        %734 = vst.msk [vmem:[#allocation2 + $0x78] sm:$0xff] %vm718, %v701
        %s735 = sadd.s32 %s211, 2
        %s736 = smul.u32 %s735, 24
        %s737 = scalar_lea.vmem %s209, %s736
        %v738 = vld [vmem:[%s737] sm:$0xff]
        %v739 = vld [vmem:[%s737 + $0x8] sm:$0xff]
        %v740 = vld [vmem:[%s737 + $0x18] sm:$0xff]
        %v741 = vld [vmem:[%s737 + $0x20] sm:$0xff]
        %v742 = vld [vmem:[%s737 + $0x30] sm:$0xff]
        %v743 = vld [vmem:[%s737 + $0x38] sm:$0xff]
        %v744 = vld [vmem:[%s737 + $0x48] sm:$0xff]
        %v745 = vld [vmem:[%s737 + $0x50] sm:$0xff]
        %v746 = vld [vmem:[%s737 + $0x60] sm:$0xff]
        %v747 = vld [vmem:[%s737 + $0x68] sm:$0xff]
        %v748 = vld [vmem:[%s737 + $0x78] sm:$0xff]
        %v749 = vld [vmem:[%s737 + $0x80] sm:$0xff]
        %v750 = vld [vmem:[%s737 + $0x90] sm:$0xff]
        %v751 = vld [vmem:[%s737 + $0x98] sm:$0xff]
        %v752 = vld [vmem:[%s737 + $0xa8] sm:$0xff]
        %v753 = vld [vmem:[%s737 + $0xb0] sm:$0xff]
        %770 = vrot.lane.b32.xlu0 %v738, 24
        %v771 = vpop.permute.xlu0 %770
        %772 = vrot.lane.b32.xlu0 %v739, 24
        %v773 = vpop.permute.xlu0 %772
        %774 = vrot.lane.b32.xlu0 %v740, 24
        %v775 = vpop.permute.xlu0 %774
        %776 = vrot.lane.b32.xlu0 %v741, 24
        %v777 = vpop.permute.xlu0 %776
        %778 = vrot.lane.b32.xlu0 %v742, 24
        %v779 = vpop.permute.xlu0 %778
        %780 = vrot.lane.b32.xlu0 %v743, 24
        %v781 = vpop.permute.xlu0 %780
        %782 = vrot.lane.b32.xlu0 %v744, 24
        %v783 = vpop.permute.xlu0 %782
        %784 = vrot.lane.b32.xlu0 %v745, 24
        %v785 = vpop.permute.xlu0 %784
        %786 = vrot.lane.b32.xlu0 %v746, 24
        %v787 = vpop.permute.xlu0 %786
        %788 = vrot.lane.b32.xlu0 %v747, 24
        %v789 = vpop.permute.xlu0 %788
        %790 = vrot.lane.b32.xlu0 %v748, 24
        %v791 = vpop.permute.xlu0 %790
        %792 = vrot.lane.b32.xlu0 %v749, 24
        %v793 = vpop.permute.xlu0 %792
        %794 = vrot.lane.b32.xlu0 %v750, 24
        %v795 = vpop.permute.xlu0 %794
        %796 = vrot.lane.b32.xlu0 %v751, 24
        %v797 = vpop.permute.xlu0 %796
        %798 = vrot.lane.b32.xlu0 %v752, 24
        %v799 = vpop.permute.xlu0 %798
        %800 = vrot.lane.b32.xlu0 %v753, 24
        %v801 = vpop.permute.xlu0 %800
        %vm818 = vcmask 228544
        %819 = vst.msk [vmem:[#allocation2] sm:$0xff] %vm818, %v771
        %820 = vst.msk [vmem:[#allocation2 + $0x8] sm:$0xff] %vm818, %v773
        %821 = vst.msk [vmem:[#allocation2 + $0x10] sm:$0xff] %vm818, %v775
        %822 = vst.msk [vmem:[#allocation2 + $0x18] sm:$0xff] %vm818, %v777
        %823 = vst.msk [vmem:[#allocation2 + $0x20] sm:$0xff] %vm818, %v779
        %824 = vst.msk [vmem:[#allocation2 + $0x28] sm:$0xff] %vm818, %v781
        %825 = vst.msk [vmem:[#allocation2 + $0x30] sm:$0xff] %vm818, %v783
        %826 = vst.msk [vmem:[#allocation2 + $0x38] sm:$0xff] %vm818, %v785
        %827 = vst.msk [vmem:[#allocation2 + $0x40] sm:$0xff] %vm818, %v787
        %828 = vst.msk [vmem:[#allocation2 + $0x48] sm:$0xff] %vm818, %v789
        %829 = vst.msk [vmem:[#allocation2 + $0x50] sm:$0xff] %vm818, %v791
        %830 = vst.msk [vmem:[#allocation2 + $0x58] sm:$0xff] %vm818, %v793
        %831 = vst.msk [vmem:[#allocation2 + $0x60] sm:$0xff] %vm818, %v795
        %832 = vst.msk [vmem:[#allocation2 + $0x68] sm:$0xff] %vm818, %v797
        %833 = vst.msk [vmem:[#allocation2 + $0x70] sm:$0xff] %vm818, %v799
        %834 = vst.msk [vmem:[#allocation2 + $0x78] sm:$0xff] %vm818, %v801
        %v835 = vld [vmem:[%s737 + $0x1] sm:$0xff]
        %v836 = vld [vmem:[%s737 + $0x9] sm:$0xff]
        %v837 = vld [vmem:[%s737 + $0x19] sm:$0xff]
        %v838 = vld [vmem:[%s737 + $0x21] sm:$0xff]
        %v839 = vld [vmem:[%s737 + $0x31] sm:$0xff]
        %v840 = vld [vmem:[%s737 + $0x39] sm:$0xff]
        %v841 = vld [vmem:[%s737 + $0x49] sm:$0xff]
        %v842 = vld [vmem:[%s737 + $0x51] sm:$0xff]
        %v843 = vld [vmem:[%s737 + $0x61] sm:$0xff]
        %v844 = vld [vmem:[%s737 + $0x69] sm:$0xff]
        %v845 = vld [vmem:[%s737 + $0x79] sm:$0xff]
        %v846 = vld [vmem:[%s737 + $0x81] sm:$0xff]
        %v847 = vld [vmem:[%s737 + $0x91] sm:$0xff]
        %v848 = vld [vmem:[%s737 + $0x99] sm:$0xff]
        %v849 = vld [vmem:[%s737 + $0xa9] sm:$0xff]
        %v850 = vld [vmem:[%s737 + $0xb1] sm:$0xff]
        %867 = vrot.lane.b32.xlu0 %v835, 28
        %v868 = vpop.permute.xlu0 %867
        %869 = vrot.lane.b32.xlu0 %v836, 28
        %v870 = vpop.permute.xlu0 %869
        %871 = vrot.lane.b32.xlu0 %v837, 28
        %v872 = vpop.permute.xlu0 %871
        %873 = vrot.lane.b32.xlu0 %v838, 28
        %v874 = vpop.permute.xlu0 %873
        %875 = vrot.lane.b32.xlu0 %v839, 28
        %v876 = vpop.permute.xlu0 %875
        %877 = vrot.lane.b32.xlu0 %v840, 28
        %v878 = vpop.permute.xlu0 %877
        %879 = vrot.lane.b32.xlu0 %v841, 28
        %v880 = vpop.permute.xlu0 %879
        %881 = vrot.lane.b32.xlu0 %v842, 28
        %v882 = vpop.permute.xlu0 %881
        %883 = vrot.lane.b32.xlu0 %v843, 28
        %v884 = vpop.permute.xlu0 %883
        %885 = vrot.lane.b32.xlu0 %v844, 28
        %v886 = vpop.permute.xlu0 %885
        %887 = vrot.lane.b32.xlu0 %v845, 28
        %v888 = vpop.permute.xlu0 %887
        %889 = vrot.lane.b32.xlu0 %v846, 28
        %v890 = vpop.permute.xlu0 %889
        %891 = vrot.lane.b32.xlu0 %v847, 28
        %v892 = vpop.permute.xlu0 %891
        %893 = vrot.lane.b32.xlu0 %v848, 28
        %v894 = vpop.permute.xlu0 %893
        %895 = vrot.lane.b32.xlu0 %v849, 28
        %v896 = vpop.permute.xlu0 %895
        %897 = vrot.lane.b32.xlu0 %v850, 28
        %v898 = vpop.permute.xlu0 %897
        %vm915 = vcmask 261344
        %916 = vst.msk [vmem:[#allocation2] sm:$0xff] %vm915, %v868
        %917 = vst.msk [vmem:[#allocation2 + $0x8] sm:$0xff] %vm915, %v870
        %918 = vst.msk [vmem:[#allocation2 + $0x10] sm:$0xff] %vm915, %v872
        %919 = vst.msk [vmem:[#allocation2 + $0x18] sm:$0xff] %vm915, %v874
        %920 = vst.msk [vmem:[#allocation2 + $0x20] sm:$0xff] %vm915, %v876
        %921 = vst.msk [vmem:[#allocation2 + $0x28] sm:$0xff] %vm915, %v878
        %922 = vst.msk [vmem:[#allocation2 + $0x30] sm:$0xff] %vm915, %v880
        %923 = vst.msk [vmem:[#allocation2 + $0x38] sm:$0xff] %vm915, %v882
        %924 = vst.msk [vmem:[#allocation2 + $0x40] sm:$0xff] %vm915, %v884
        %925 = vst.msk [vmem:[#allocation2 + $0x48] sm:$0xff] %vm915, %v886
        %926 = vst.msk [vmem:[#allocation2 + $0x50] sm:$0xff] %vm915, %v888
        %927 = vst.msk [vmem:[#allocation2 + $0x58] sm:$0xff] %vm915, %v890
        %928 = vst.msk [vmem:[#allocation2 + $0x60] sm:$0xff] %vm915, %v892
        %929 = vst.msk [vmem:[#allocation2 + $0x68] sm:$0xff] %vm915, %v894
        %930 = vst.msk [vmem:[#allocation2 + $0x70] sm:$0xff] %vm915, %v896
        %931 = vst.msk [vmem:[#allocation2 + $0x78] sm:$0xff] %vm915, %v898
        %v932 = vld [vmem:[%s737 + $0x2] sm:$0xff]
        %v933 = vld [vmem:[%s737 + $0xa] sm:$0xff]
        %v934 = vld [vmem:[%s737 + $0x1a] sm:$0xff]
        %v935 = vld [vmem:[%s737 + $0x22] sm:$0xff]
        %v936 = vld [vmem:[%s737 + $0x32] sm:$0xff]
        %v937 = vld [vmem:[%s737 + $0x3a] sm:$0xff]
        %v938 = vld [vmem:[%s737 + $0x4a] sm:$0xff]
        %v939 = vld [vmem:[%s737 + $0x52] sm:$0xff]
        %v940 = vld [vmem:[%s737 + $0x62] sm:$0xff]
        %v941 = vld [vmem:[%s737 + $0x6a] sm:$0xff]
        %v942 = vld [vmem:[%s737 + $0x7a] sm:$0xff]
        %v943 = vld [vmem:[%s737 + $0x82] sm:$0xff]
        %v944 = vld [vmem:[%s737 + $0x92] sm:$0xff]
        %v945 = vld [vmem:[%s737 + $0x9a] sm:$0xff]
        %v946 = vld [vmem:[%s737 + $0xaa] sm:$0xff]
        %v947 = vld [vmem:[%s737 + $0xb2] sm:$0xff]
        %964 = vrot.lane.b32.xlu0 %v932, 32
        %v965 = vpop.permute.xlu0 %964
        %966 = vrot.lane.b32.xlu0 %v933, 32
        %v967 = vpop.permute.xlu0 %966
        %968 = vrot.lane.b32.xlu0 %v934, 32
        %v969 = vpop.permute.xlu0 %968
        %970 = vrot.lane.b32.xlu0 %v935, 32
        %v971 = vpop.permute.xlu0 %970
        %972 = vrot.lane.b32.xlu0 %v936, 32
        %v973 = vpop.permute.xlu0 %972
        %974 = vrot.lane.b32.xlu0 %v937, 32
        %v975 = vpop.permute.xlu0 %974
        %976 = vrot.lane.b32.xlu0 %v938, 32
        %v977 = vpop.permute.xlu0 %976
        %978 = vrot.lane.b32.xlu0 %v939, 32
        %v979 = vpop.permute.xlu0 %978
        %980 = vrot.lane.b32.xlu0 %v940, 32
        %v981 = vpop.permute.xlu0 %980
        %982 = vrot.lane.b32.xlu0 %v941, 32
        %v983 = vpop.permute.xlu0 %982
        %984 = vrot.lane.b32.xlu0 %v942, 32
        %v985 = vpop.permute.xlu0 %984
        %986 = vrot.lane.b32.xlu0 %v943, 32
        %v987 = vpop.permute.xlu0 %986
        %988 = vrot.lane.b32.xlu0 %v944, 32
        %v989 = vpop.permute.xlu0 %988
        %990 = vrot.lane.b32.xlu0 %v945, 32
        %v991 = vpop.permute.xlu0 %990
        %992 = vrot.lane.b32.xlu0 %v946, 32
        %v993 = vpop.permute.xlu0 %992
        %994 = vrot.lane.b32.xlu0 %v947, 32
        %v995 = vpop.permute.xlu0 %994
        %vm1012 = vcmask 294144
        %1013 = vst.msk [vmem:[#allocation2] sm:$0xff] %vm1012, %v965
        %1014 = vst.msk [vmem:[#allocation2 + $0x8] sm:$0xff] %vm1012, %v967
        %1015 = vst.msk [vmem:[#allocation2 + $0x10] sm:$0xff] %vm1012, %v969
        %1016 = vst.msk [vmem:[#allocation2 + $0x18] sm:$0xff] %vm1012, %v971
        %1017 = vst.msk [vmem:[#allocation2 + $0x20] sm:$0xff] %vm1012, %v973
        %1018 = vst.msk [vmem:[#allocation2 + $0x28] sm:$0xff] %vm1012, %v975
        %1019 = vst.msk [vmem:[#allocation2 + $0x30] sm:$0xff] %vm1012, %v977
        %1020 = vst.msk [vmem:[#allocation2 + $0x38] sm:$0xff] %vm1012, %v979
        %1021 = vst.msk [vmem:[#allocation2 + $0x40] sm:$0xff] %vm1012, %v981
        %1022 = vst.msk [vmem:[#allocation2 + $0x48] sm:$0xff] %vm1012, %v983
        %1023 = vst.msk [vmem:[#allocation2 + $0x50] sm:$0xff] %vm1012, %v985
        %1024 = vst.msk [vmem:[#allocation2 + $0x58] sm:$0xff] %vm1012, %v987
        %1025 = vst.msk [vmem:[#allocation2 + $0x60] sm:$0xff] %vm1012, %v989
        %1026 = vst.msk [vmem:[#allocation2 + $0x68] sm:$0xff] %vm1012, %v991
        %1027 = vst.msk [vmem:[#allocation2 + $0x70] sm:$0xff] %vm1012, %v993
        %1028 = vst.msk [vmem:[#allocation2 + $0x78] sm:$0xff] %vm1012, %v995
        %v1029 = vld [vmem:[#allocation2] sm:$0xff]
        %v1030 = vld [vmem:[#allocation2 + $0x8] sm:$0xff]
        %v1031 = vld [vmem:[#allocation2 + $0x10] sm:$0xff]
        %v1032 = vld [vmem:[#allocation2 + $0x18] sm:$0xff]
        %v1033 = vld [vmem:[#allocation2 + $0x20] sm:$0xff]
        %v1034 = vld [vmem:[#allocation2 + $0x28] sm:$0xff]
        %v1035 = vld [vmem:[#allocation2 + $0x30] sm:$0xff]
        %v1036 = vld [vmem:[#allocation2 + $0x38] sm:$0xff]
        %v1037 = vld [vmem:[#allocation2 + $0x40] sm:$0xff]
        %v1038 = vld [vmem:[#allocation2 + $0x48] sm:$0xff]
        %v1039 = vld [vmem:[#allocation2 + $0x50] sm:$0xff]
        %v1040 = vld [vmem:[#allocation2 + $0x58] sm:$0xff]
        %v1041 = vld [vmem:[#allocation2 + $0x60] sm:$0xff]
        %v1042 = vld [vmem:[#allocation2 + $0x68] sm:$0xff]
        %v1043 = vld [vmem:[#allocation2 + $0x70] sm:$0xff]
        %v1044 = vld [vmem:[#allocation2 + $0x78] sm:$0xff]
        %v1045 = vld [vmem:[%s1] sm:$0xff]
        %v1046 = vld [vmem:[%s1 + $0x8] sm:$0xff]
        %v1047 = vld [vmem:[%s1 + $0x10] sm:$0xff]
        %v1048 = vld [vmem:[%s1 + $0x18] sm:$0xff]
        %v1049 = vld [vmem:[%s1 + $0x20] sm:$0xf]
        %vm1050 = vcmask 293888
        %v1052 = vsel %vm1050, %v1029, 0
        %v1055 = vsel %vm1050, %v1030, 0
        %v1058 = vsel %vm1050, %v1031, 0
        %v1061 = vsel %vm1050, %v1032, 0
        %v1064 = vsel %vm1050, %v1033, 0
        %v1067 = vsel %vm1050, %v1034, 0
        %v1070 = vsel %vm1050, %v1035, 0
        %v1073 = vsel %vm1050, %v1036, 0
        %v1076 = vsel %vm1050, %v1037, 0
        %v1079 = vsel %vm1050, %v1038, 0
        %v1082 = vsel %vm1050, %v1039, 0
        %v1085 = vsel %vm1050, %v1040, 0
        %v1088 = vsel %vm1050, %v1041, 0
        %v1091 = vsel %vm1050, %v1042, 0
        %v1094 = vsel %vm1050, %v1043, 0
        %v1097 = vsel %vm1050, %v1044, 0
        %vm1099 = vcmask 1043456
        %v1101 = vsel %vm1099, %v1049, 0
        %1103 = vmatpush.msra.mxu0 0.0
        %1104 = vmatpush.msra.mxu0 0.0
        %1105 = vmatpush.msra.mxu0 0.0
        %1106 = vmatpush.msra.mxu0 0.0
        %1107 = vmatpush.msra.mxu0 0.0
        %1108 = vmatpush.msra.mxu0 0.0
        %1109 = vmatpush.msra.mxu0 0.0
        %1110 = vmatpush.msra.mxu0 0.0
        %1111 = vmatpush.msra.mxu0 0.0
        %1112 = vmatpush.msra.mxu0 0.0
        %1113 = vmatpush.msra.mxu0 0.0
        %1114 = vmatpush.msra.mxu0 %v1101
        %1115 = vmatpush.msra.mxu0 %v1048
        %1116 = vmatpush.msra.mxu0 %v1047
        %1117 = vmatpush.msra.mxu0 %v1046
        %1118 = vmatpush.msra.mxu0 %v1045
        %1119 = vmatmul.f32.gmra.mxu0 %v1052
        %v1120 = vpop.f32.mrf.mxu0
        %v1121 = vadd.f32 0.0, %v1120
        %1122 = vmatmul.f32.gmra.mxu0 %v1055
        %v1123 = vpop.f32.mrf.mxu0
        %v1124 = vadd.f32 0.0, %v1123
        %1125 = vmatmul.f32.gmra.mxu0 %v1058
        %v1126 = vpop.f32.mrf.mxu0
        %v1127 = vadd.f32 0.0, %v1126
        %1128 = vmatmul.f32.gmra.mxu0 %v1061
        %v1129 = vpop.f32.mrf.mxu0
        %v1130 = vadd.f32 0.0, %v1129
        %1131 = vmatmul.f32.gmra.mxu0 %v1064
        %v1132 = vpop.f32.mrf.mxu0
        %v1133 = vadd.f32 0.0, %v1132
        %1134 = vmatmul.f32.gmra.mxu0 %v1067
        %v1135 = vpop.f32.mrf.mxu0
        %v1136 = vadd.f32 0.0, %v1135
        %1137 = vmatmul.f32.gmra.mxu0 %v1070
        %v1138 = vpop.f32.mrf.mxu0
        %v1139 = vadd.f32 0.0, %v1138
        %1140 = vmatmul.f32.gmra.mxu0 %v1073
        %v1141 = vpop.f32.mrf.mxu0
        %v1142 = vadd.f32 0.0, %v1141
        %1143 = vmatmul.f32.gmra.mxu0 %v1076
        %v1144 = vpop.f32.mrf.mxu0
        %v1145 = vadd.f32 0.0, %v1144
        %1146 = vmatmul.f32.gmra.mxu0 %v1079
        %v1147 = vpop.f32.mrf.mxu0
        %v1148 = vadd.f32 0.0, %v1147
        %1149 = vmatmul.f32.gmra.mxu0 %v1082
        %v1150 = vpop.f32.mrf.mxu0
        %v1151 = vadd.f32 0.0, %v1150
        %1152 = vmatmul.f32.gmra.mxu0 %v1085
        %v1153 = vpop.f32.mrf.mxu0
        %v1154 = vadd.f32 0.0, %v1153
        %1155 = vmatmul.f32.gmra.mxu0 %v1088
        %v1156 = vpop.f32.mrf.mxu0
        %v1157 = vadd.f32 0.0, %v1156
        %1158 = vmatmul.f32.gmra.mxu0 %v1091
        %v1159 = vpop.f32.mrf.mxu0
        %v1160 = vadd.f32 0.0, %v1159
        %1161 = vmatmul.f32.gmra.mxu0 %v1094
        %v1162 = vpop.f32.mrf.mxu0
        %v1163 = vadd.f32 0.0, %v1162
        %1164 = vmatmul.f32.gmra.mxu0 %v1097
        %v1165 = vpop.f32.mrf.mxu0
        %v1166 = vadd.f32 0.0, %v1165
        %1167 = vdwg.mxu0
        %v1168 = vld [vmem:[%s2] sm:$0x1]
        %v1170 = vperm.slane %v1168, 0
        %v1172 = vmul.f32 %v1121, %v1170
        %v1173 = vmul.f32 %v1124, %v1170
        %v1174 = vmul.f32 %v1127, %v1170
        %v1175 = vmul.f32 %v1130, %v1170
        %v1176 = vmul.f32 %v1133, %v1170
        %v1177 = vmul.f32 %v1136, %v1170
        %v1178 = vmul.f32 %v1139, %v1170
        %v1179 = vmul.f32 %v1142, %v1170
        %v1180 = vmul.f32 %v1145, %v1170
        %v1181 = vmul.f32 %v1148, %v1170
        %v1182 = vmul.f32 %v1151, %v1170
        %v1183 = vmul.f32 %v1154, %v1170
        %v1184 = vmul.f32 %v1157, %v1170
        %v1185 = vmul.f32 %v1160, %v1170
        %v1186 = vmul.f32 %v1163, %v1170
        %v1187 = vmul.f32 %v1166, %v1170
        %v1188 = vld [vmem:[%s3] sm:$0x1]
        %v1190 = vperm.slane %v1188, 0
        %v1192 = vadd.f32 %v1172, %v1190
        %v1193 = vadd.f32 %v1173, %v1190
        %v1194 = vadd.f32 %v1174, %v1190
        %v1195 = vadd.f32 %v1175, %v1190
        %v1196 = vadd.f32 %v1176, %v1190
        %v1197 = vadd.f32 %v1177, %v1190
        %v1198 = vadd.f32 %v1178, %v1190
        %v1199 = vadd.f32 %v1179, %v1190
        %v1200 = vadd.f32 %v1180, %v1190
        %v1201 = vadd.f32 %v1181, %v1190
        %v1202 = vadd.f32 %v1182, %v1190
        %v1203 = vadd.f32 %v1183, %v1190
        %v1204 = vadd.f32 %v1184, %v1190
        %v1205 = vadd.f32 %v1185, %v1190
        %v1206 = vadd.f32 %v1186, %v1190
        %v1207 = vadd.f32 %v1187, %v1190
        %vm1208 = vcmp.ge.f32.partialorder %v1192, 0.0
        %vm1209 = vcmp.ge.f32.partialorder %v1193, 0.0
        %vm1210 = vcmp.ge.f32.partialorder %v1194, 0.0
        %vm1211 = vcmp.ge.f32.partialorder %v1195, 0.0
        %vm1212 = vcmp.ge.f32.partialorder %v1196, 0.0
        %vm1213 = vcmp.ge.f32.partialorder %v1197, 0.0
        %vm1214 = vcmp.ge.f32.partialorder %v1198, 0.0
        %vm1215 = vcmp.ge.f32.partialorder %v1199, 0.0
        %vm1216 = vcmp.ge.f32.partialorder %v1200, 0.0
        %vm1217 = vcmp.ge.f32.partialorder %v1201, 0.0
        %vm1218 = vcmp.ge.f32.partialorder %v1202, 0.0
        %vm1219 = vcmp.ge.f32.partialorder %v1203, 0.0
        %vm1220 = vcmp.ge.f32.partialorder %v1204, 0.0
        %vm1221 = vcmp.ge.f32.partialorder %v1205, 0.0
        %vm1222 = vcmp.ge.f32.partialorder %v1206, 0.0
        %vm1223 = vcmp.ge.f32.partialorder %v1207, 0.0
        %v1224 = vmul.f32 %v1192, 0.2
        %v1225 = vmul.f32 %v1193, 0.2
        %v1226 = vmul.f32 %v1194, 0.2
        %v1227 = vmul.f32 %v1195, 0.2
        %v1228 = vmul.f32 %v1196, 0.2
        %v1229 = vmul.f32 %v1197, 0.2
        %v1230 = vmul.f32 %v1198, 0.2
        %v1231 = vmul.f32 %v1199, 0.2
        %v1232 = vmul.f32 %v1200, 0.2
        %v1233 = vmul.f32 %v1201, 0.2
        %v1234 = vmul.f32 %v1202, 0.2
        %v1235 = vmul.f32 %v1203, 0.2
        %v1236 = vmul.f32 %v1204, 0.2
        %v1237 = vmul.f32 %v1205, 0.2
        %v1238 = vmul.f32 %v1206, 0.2
        %v1239 = vmul.f32 %v1207, 0.2
        %v1240 = vsel %vm1208, %v1192, %v1224
        %v1241 = vsel %vm1209, %v1193, %v1225
        %v1242 = vsel %vm1210, %v1194, %v1226
        %v1243 = vsel %vm1211, %v1195, %v1227
        %v1244 = vsel %vm1212, %v1196, %v1228
        %v1245 = vsel %vm1213, %v1197, %v1229
        %v1246 = vsel %vm1214, %v1198, %v1230
        %v1247 = vsel %vm1215, %v1199, %v1231
        %v1248 = vsel %vm1216, %v1200, %v1232
        %v1249 = vsel %vm1217, %v1201, %v1233
        %v1250 = vsel %vm1218, %v1202, %v1234
        %v1251 = vsel %vm1219, %v1203, %v1235
        %v1252 = vsel %vm1220, %v1204, %v1236
        %v1253 = vsel %vm1221, %v1205, %v1237
        %v1254 = vsel %vm1222, %v1206, %v1238
        %v1255 = vsel %vm1223, %v1207, %v1239
        %1256 = vst [vmem:[%s204] sm:$0xff] %v1240
        %1257 = vst [vmem:[%s204 + $0x8] sm:$0xff] %v1241
        %1258 = vst [vmem:[%s204 + $0x10] sm:$0xff] %v1242
        %1259 = vst [vmem:[%s204 + $0x18] sm:$0xff] %v1243
        %1260 = vst [vmem:[%s204 + $0x20] sm:$0xff] %v1244
        %1261 = vst [vmem:[%s204 + $0x28] sm:$0xff] %v1245
        %1262 = vst [vmem:[%s204 + $0x30] sm:$0xff] %v1246
        %1263 = vst [vmem:[%s204 + $0x38] sm:$0xff] %v1247
        %1264 = vst [vmem:[%s204 + $0x40] sm:$0xff] %v1248
        %1265 = vst [vmem:[%s204 + $0x48] sm:$0xff] %v1249
        %1266 = vst [vmem:[%s204 + $0x50] sm:$0xff] %v1250
        %1267 = vst [vmem:[%s204 + $0x58] sm:$0xff] %v1251
        %1268 = vst [vmem:[%s204 + $0x60] sm:$0xff] %v1252
        %1269 = vst [vmem:[%s204 + $0x68] sm:$0xff] %v1253
        %1270 = vst [vmem:[%s204 + $0x70] sm:$0xff] %v1254
        %1271 = vst [vmem:[%s204 + $0x78] sm:$0xff] %v1255
        %s1272 = sand.u32 %s129, 1
        %s1273 = scalar_lea.sflag [#allocation4], %s1272
        %s1274 = sand.u32 %s129, 1
        %s1275 = smul.addr %s1274, 128
        %s1276 = scalar_lea.vmem [#allocation3], %s1275
        // Predicated region
        $region37: #{tpu_custom_call.1} parent=35 // pred_check
          %p1277 = pneg %p139
        $region38: #{tpu_custom_call.1} parent=35 // pred_check_branch
          %1279 = sbr.rel (%p1277) target = $region40
        $region39: #{tpu_custom_call.1} parent=35 // pred_region
          %s1280 = smul.u32 8, %s23
          %1282 = vsyncadd %s1273, 0
          %s1283 = smul.addr %s1280, 2
          %s1284 = smul.addr %s22, 32
          %s1285 = sadd.s32 %s1283, %s1284
          %s1286 = smul.addr %s1285, 8
          %s1287 = scalar_lea.hbm %s4, %s1286
          %s1288 = sshll.u32 %s1276, 4
          %s1289 = int_to_ptr.vmem [resolvable:$true] %s1288
          %s1290 = sshll.u32 %s1287, 4
          %s1291 = int_to_ptr.hbm [resolvable:$true] %s1290
          %1296 = dma.vmem_to_hbm [thread:$0]  %s1289, 2048, %s1291, %s1273, 128, 128, 8
        $region40: #{tpu_custom_call.1} parent=35 // pred_fallthru
          _
      $region36: #{tpu_custom_call.1} parent=5 // pred_fallthru
        _
      %p1297 = scmp.le.s32.totalorder 2, %s13
      // Predicated region
      $region41: #{tpu_custom_call.1} parent=5 // pred_check
        %p1298 = pneg %p1297
      $region42: #{tpu_custom_call.1} parent=5 // pred_check_branch
        %1300 = sbr.rel (%p1298) target = $region44
      $region43: #{tpu_custom_call.1} parent=5 // pred_region
        %s1301 = ssub.s32 %s13, 2
        // Predicated region
        $region45: #{tpu_custom_call.1} parent=43 // pred_check
          %p1302 = pneg %p145
        $region46: #{tpu_custom_call.1} parent=43 // pred_check_branch
          %1304 = sbr.rel (%p1302) target = $region48
        $region47: #{tpu_custom_call.1} parent=43 // pred_region
          %s1305 = sand.u32 %s130, 1
          %s1306 = scalar_lea.sflag [#allocation4], %s1305
          %s1307 = sand.u32 %s130, 1
          %s1308 = smul.addr %s1307, 128
          %s1309 = scalar_lea.vmem [#allocation3], %s1308
          %1311 = dma.done %s1306, 2048
        $region48: #{tpu_custom_call.1} parent=43 // pred_fallthru
          _
      $region44: #{tpu_custom_call.1} parent=5 // pred_fallthru
        _
    $region6: #{tpu_custom_call.1} parent=1 // loop_footer
      %s17 = sadd.s32 1, %s13
    $region7: #{tpu_custom_call.1} parent=1 // loop_footer_branch
      %12 = sbr.rel target = $region3
    $region8: #{tpu_custom_call.1} parent=1 // loop_exit
      _
    %1312 = vsyncpa [#allocation4], 1
    %s1313 = scalar_lea.sflag [#allocation4], 1
    %1314 = vsyncpa %s1313, 1

</llo_original>
